<compile_context>
chip_gen: v7x
topology: tpu7x:2x2x1
jax: 0.10.0
libtpu: 0.0.40
codegen_flags: <defaults>
</compile_context>

<pallas_src>
import functools
import math

import jax
import jax.numpy as jnp
from jax import lax
from jax.experimental import pallas as pl
from jax.experimental.pallas import tpu as pltpu

_LN_EPS = 1e-5  # torch.nn.LayerNorm default


# ----------------------------------------------------------------- generation-aware budgets
def _vmem_limit_bytes():
    cap = 64 * 1024 * 1024
    try:
        info = pltpu.get_tpu_info()
        cap = int(getattr(info, "vmem_capacity_bytes", cap)) or cap
    except Exception:
        pass  # unknown chip / interpret mode: keep the conservative default
    # 3/4 of physical, capped at 96 MiB (v5e/v6e 128 MiB, v7x 64 MiB -> 48 MiB scoped)
    return max(32 * 1024 * 1024, min(cap * 3 // 4, 96 * 1024 * 1024))


_VMEM_LIMIT = _vmem_limit_bytes()


def _compiler_params(*sems):
    return pltpu.CompilerParams(dimension_semantics=sems, vmem_limit_bytes=_VMEM_LIMIT)


def _pick_row_tile(n_rows, per_row_elems, resident_elems):
    """Largest multiple-of-8 row tile whose double-buffered f32 working set fits the budget."""
    avail = int(_VMEM_LIMIT * 0.75) - 8 * resident_elems       # weights: 2 bufs x 4 B
    avail = max(avail, _VMEM_LIMIT // 8)
    t = avail // (8 * max(per_row_elems, 1))                   # row blocks: 2 bufs x 4 B
    t = max(8, min(int(t), 2048))
    t -= t % 8
    return n_rows if t >= n_rows else t


def _seq_tile(seq, cap):
    """Row tile along the sequence axis; must divide seq so the PE row indexing stays exact."""
    if seq <= max(cap, 8):
        return seq
    t = cap - cap % 8
    while t >= 8:
        if seq % t == 0:
            return t
        t -= 8
    # TODO(synk): no multiple-of-8 divisor of seq <= cap exists; falling back to the full
    # sequence can exceed the VMEM budget for huge, oddly-sized sequence lengths.
    return seq


# ----------------------------------------------------------------------------- PE table
def build_pe_table(d_model: int, max_len: int = 5000) -> jnp.ndarray:
    """Sinusoidal table, identical to PositionalEncoding.__init__ (buffer pe[:, 0, :])."""
    position = jnp.arange(max_len, dtype=jnp.float32)[:, None]
    div_term = jnp.exp(
        jnp.arange(0, d_model, 2, dtype=jnp.float32) * (-math.log(10000.0) / d_model)
    )
    ang = position * div_term
    pe = jnp.zeros((max_len, d_model), jnp.float32)
    pe = pe.at[:, 0::2].set(jnp.sin(ang))
    pe = pe.at[:, 1::2].set(jnp.cos(ang))
    return pe


# ----------------------------------------------- K1: embed + PE + LayerNorm1 + QKV (fused)
def _embed_pe_ln_qkv_kernel(x_ref, we_ref, be_ref, pe_ref, g_ref, b_ref, wq_ref, bq_ref,
                            h_ref, qkv_ref, *, eps):
    # embedding (sqrt(d_model) already folded into we/be) + positional encoding
    h = jnp.dot(x_ref[...].astype(jnp.bfloat16), we_ref[...].astype(jnp.bfloat16),
                preferred_element_type=jnp.float32)
    h = h + be_ref[...] + pe_ref[...]
    h_ref[...] = h.astype(h_ref.dtype)
    # LayerNorm1 (f32 statistics) + fused QKV projection of the first encoder layer
    mu = jnp.mean(h, axis=-1, keepdims=True)
    xc = h - mu
    var = jnp.mean(xc * xc, axis=-1, keepdims=True)
    hn = xc * lax.rsqrt(var + eps) * g_ref[...] + b_ref[...]
    qkv = jnp.dot(hn.astype(jnp.bfloat16), wq_ref[...].astype(jnp.bfloat16),
                  preferred_element_type=jnp.float32) + bq_ref[...]
    qkv_ref[...] = qkv.astype(qkv_ref.dtype)


def embed_pe_ln_qkv(x2, w_emb_s, b_emb_s, pe_table, ln_g, ln_b, w_qkv, b_qkv, *, batch, seq):
    N, in_dim = x2.shape
    D = w_emb_s.shape[1]
    D3 = w_qkv.shape[1]
    per_row = in_dim + D + D + D3                     # x, pe, h out, qkv out
    resident = in_dim * D + D * D3
    tS = _seq_tile(seq, _pick_row_tile(seq, per_row, resident))
    n_sb = seq // tS
    kernel = functools.partial(_embed_pe_ln_qkv_kernel, eps=_LN_EPS)

    def row_spec(cols):
        return pl.BlockSpec((tS, cols), lambda si, bi: (bi * n_sb + si, 0))

    def const_spec(rows, cols):
        return pl.BlockSpec((rows, cols), lambda si, bi: (0, 0))

    return pl.pallas_call(
        kernel,
        out_shape=(jax.ShapeDtypeStruct((N, D), jnp.float32),
                   jax.ShapeDtypeStruct((N, D3), jnp.float32)),
        # seq block outer, batch inner: the PE tile (indexed by si only) and the weights keep
        # the same block index across consecutive batch steps, so they are not re-DMA'd.
        grid=(n_sb, batch),
        in_specs=[
            row_spec(in_dim),
            const_spec(in_dim, D),
            const_spec(1, D),
            pl.BlockSpec((tS, D), lambda si, bi: (si, 0)),   # PE rows straight from the table
            const_spec(1, D),
            const_spec(1, D),
            const_spec(D, D3),
            const_spec(1, D3),
        ],
        out_specs=(row_spec(D), row_spec(D3)),
        compiler_params=_compiler_params("parallel", "parallel"),
    )(x2, w_emb_s, b_emb_s, pe_table, ln_g, ln_b, w_qkv, b_qkv)


# ------------------------------------- K3/K4: matmul + bias + residual + LayerNorm + matmul
def _matres_ln_matmul_kernel(x_ref, wa_ref, ba_ref, res_ref, g_ref, be_ref, wb_ref, bb_ref,
                             r_ref, y_ref, *, eps, relu):
    # r = residual + x @ Wa + ba
    r = jnp.dot(x_ref[...].astype(jnp.bfloat16), wa_ref[...].astype(jnp.bfloat16),
                preferred_element_type=jnp.float32)
    r = r + ba_ref[...] + res_ref[...]
    r_ref[...] = r.astype(r_ref.dtype)
    # y = [relu](LN(r) @ Wb + bb)   (LN statistics in f32)
    mu = jnp.mean(r, axis=-1, keepdims=True)
    xc = r - mu
    var = jnp.mean(xc * xc, axis=-1, keepdims=True)
    hn = xc * lax.rsqrt(var + eps) * g_ref[...] + be_ref[...]
    y = jnp.dot(hn.astype(jnp.bfloat16), wb_ref[...].astype(jnp.bfloat16),
                preferred_element_type=jnp.float32) + bb_ref[...]
    if relu:
        y = jnp.maximum(y, 0.0)
    y_ref[...] = y.astype(y_ref.dtype)


def matres_ln_matmul(x, wa, ba, residual, ln_g, ln_b, wb, bb, *, relu):
    N, Da = x.shape
    D = wa.shape[1]
    Db = wb.shape[1]
    per_row = Da + 2 * D + Db
    resident = Da * D + D * Db
    # TODO(synk): for very large dim_feedforward add a Dout grid axis over Wb columns (multiple
    # of 128/256) so the weight/output working set stays bounded on v7x's 64 MiB VMEM.
    tN = _pick_row_tile(N, per_row, resident)
    kernel = functools.partial(_matres_ln_matmul_kernel, eps=_LN_EPS, relu=relu)
    return pl.pallas_call(
        kernel,
        out_shape=(jax.ShapeDtypeStruct((N, D), jnp.float32),
                   jax.ShapeDtypeStruct((N, Db), jnp.float32)),
        grid=(pl.cdiv(N, tN),),
        in_specs=[
            pl.BlockSpec((tN, Da), lambda i: (i, 0)),
            pl.BlockSpec((Da, D), lambda i: (0, 0)),
            pl.BlockSpec((1, D), lambda i: (0, 0)),
            pl.BlockSpec((tN, D), lambda i: (i, 0)),
            pl.BlockSpec((1, D), lambda i: (0, 0)),
            pl.BlockSpec((1, D), lambda i: (0, 0)),
            pl.BlockSpec((D, Db), lambda i: (0, 0)),
            pl.BlockSpec((1, Db), lambda i: (0, 0)),
        ],
        out_specs=(pl.BlockSpec((tN, D), lambda i: (i, 0)),
                   pl.BlockSpec((tN, Db), lambda i: (i, 0))),
        compiler_params=_compiler_params("parallel"),
    )(x, wa, ba, residual, ln_g, ln_b, wb, bb)


# ------------------------------------------------- K4' (last layer): matmul + bias + residual
def _matmul_residual_kernel(x_ref, w_ref, b_ref, res_ref, o_ref):
    y = jnp.dot(x_ref[...].astype(jnp.bfloat16), w_ref[...].astype(jnp.bfloat16),
                preferred_element_type=jnp.float32) + b_ref[...]
    o_ref[...] = (res_ref[...] + y).astype(o_ref.dtype)


def matmul_bias_residual(x, w, b, residual):
    N, Da = x.shape
    D = w.shape[1]
    tN = _pick_row_tile(N, Da + 2 * D, Da * D)
    return pl.pallas_call(
        _matmul_residual_kernel,
        out_shape=jax.ShapeDtypeStruct((N, D), jnp.float32),
        grid=(pl.cdiv(N, tN),),
        in_specs=[
            pl.BlockSpec((tN, Da), lambda i: (i, 0)),
            pl.BlockSpec((Da, D), lambda i: (0, 0)),
            pl.BlockSpec((1, D), lambda i: (0, 0)),
            pl.BlockSpec((tN, D), lambda i: (i, 0)),
        ],
        out_specs=pl.BlockSpec((tN, D), lambda i: (i, 0)),
        compiler_params=_compiler_params("parallel"),
    )(x, w, b, residual)


# ----------------------------------------- K2: attention, all heads of one batch per grid step
def _attn_kernel(qkv_ref, o_ref, *, nhead, dh, scale):
    D = nhead * dh
    for h in range(nhead):      # static loop: every head of this batch element in one grid step
        q = qkv_ref[:, h * dh:(h + 1) * dh]
        k = qkv_ref[:, D + h * dh:D + (h + 1) * dh]
        v = qkv_ref[:, 2 * D + h * dh:2 * D + (h + 1) * dh]
        s = lax.dot_general(q.astype(jnp.bfloat16), k.astype(jnp.bfloat16),
                            (((1,), (1,)), ((), ())),
                            preferred_element_type=jnp.float32) * scale         # (S, S) f32
        s = s - jnp.max(s, axis=-1, keepdims=True)
        p = jnp.exp(s)
        l = jnp.sum(p, axis=-1, keepdims=True)
        p = p * pl.reciprocal(l, approx=True)     # EUP reciprocal instead of full-rate divide
        o = jnp.dot(p.astype(jnp.bfloat16), v.astype(jnp.bfloat16),
                    preferred_element_type=jnp.float32)
        o_ref[:, h * dh:(h + 1) * dh] = o.astype(o_ref.dtype)


def mha_attention(qkv, *, batch, seq, nhead):
    # qkv: (B*S, 3D) token rows. Q/K/V come straight from qkv via lane slices and the output is
    # written in the same (N, D) row layout -> no XLA head split/merge copies.
    # TODO(synk): full (S, S) scores per head; switch to a flash-style KV-tiled online-softmax
    # grid before scaling sequence length (v7x VMEM is 64 MiB).
    N, D3 = qkv.shape
    D = D3 // 3
    dh = D // nhead
    kernel = functools.partial(_attn_kernel, nhead=nhead, dh=dh, scale=1.0 / math.sqrt(dh))
    return pl.pallas_call(
        kernel,
        out_shape=jax.ShapeDtypeStruct((N, D), jnp.float32),
        grid=(batch,),
        in_specs=[pl.BlockSpec((seq, D3), lambda b: (b, 0))],
        out_specs=pl.BlockSpec((seq, D), lambda b: (b, 0)),
        compiler_params=_compiler_params("parallel"),
    )(qkv)


# ----------------------------------------------------------------------------- full forward
def transformer_encoder_forward(src, params, *, nhead):
    """src: (B, S, input_dim) -> (B,) predictions. Mirrors TransformerEncoder.forward (eval)."""
    B, S, in_dim = src.shape
    D = params["w_emb"].shape[1]
    assert D % nhead == 0
    layers = params["layers"]
    assert len(layers) >= 1
    N = B * S

    # fold the * sqrt(d_model) scale into the embedding weights (tiny one-off XLA op)
    scale = math.sqrt(D)
    w_emb_s = params["w_emb"] * scale
    b_emb_s = params["b_emb"] * scale

    # K1: embedding + PE + LayerNorm1 + QKV of layer 0 (fused)
    h, qkv = embed_pe_ln_qkv(src.reshape(N, in_dim), w_emb_s, b_emb_s, params["pe"],
                             layers[0]["ln1_g"], layers[0]["ln1_b"],
                             layers[0]["w_qkv"], layers[0]["b_qkv"], batch=B, seq=S)
    # TODO(synk): all nn.Dropout layers are identity here (eval-mode forward only).
    # TODO(synk): optional src_mask / key-padding masking is not implemented (None path only).

    for li, lyr in enumerate(layers):
        attn = mha_attention(qkv, batch=B, seq=S, nhead=nhead)
        # h = h + out_proj(attn) ; ffh = relu(W1 @ LN2(h))          (fused)
        h, ffh = matres_ln_matmul(attn, lyr["w_out"], lyr["b_out"], h,
                                  lyr["ln2_g"], lyr["ln2_b"], lyr["w1"], lyr["b1"], relu=True)
        if li + 1 < len(layers):
            nxt = layers[li + 1]
            # h = h + W2 @ ffh ; qkv = Wqkv' @ LN1'(h)               (fused with next layer)
            h, qkv = matres_ln_matmul(ffh, lyr["w2"], lyr["b2"], h,
                                      nxt["ln1_g"], nxt["ln1_b"],
                                      nxt["w_qkv"], nxt["b_qkv"], relu=False)
        else:
            h = matmul_bias_residual(ffh, lyr["w2"], lyr["b2"], h)

    # last-token gather + (B,D)x(D,1) projection: launch-overhead dominated -> plain XLA.
    last = h.reshape(B, S, D)[:, -1, :]
    pred = last @ params["w_proj"].T + params["b_proj"][0]
    return pred[:, 0]


# -------------------------------------------------------------------------- params + reference
def init_params(key, *, input_dim, d_model, num_layers, dim_feedforward, max_len=5000):
    def dense(k, fan_in, fan_out):
        kw, kb = jax.random.split(k)
        lim = 1.0 / math.sqrt(fan_in)
        w = jax.random.uniform(kw, (fan_in, fan_out), jnp.float32, -lim, lim)
        b = jax.random.uniform(kb, (1, fan_out), jnp.float32, -lim, lim)
        return w, b

    keys = jax.random.split(key, 2 + num_layers)
    w_emb, b_emb = dense(keys[0], input_dim, d_model)
    w_proj_col, b_proj = dense(keys[1], d_model, 1)
    layers = []
    for i in range(num_layers):
        k1, k2, k3, k4, k5 = jax.random.split(keys[2 + i], 5)
        w_qkv, b_qkv = dense(k1, d_model, 3 * d_model)
        w_out, b_out = dense(k2, d_model, d_model)
        w1, b1 = dense(k3, d_model, dim_feedforward)
        w2, b2 = dense(k4, dim_feedforward, d_model)
        g1, g2, g3, g4 = jax.random.split(k5, 4)
        layers.append(dict(
            ln1_g=1.0 + 0.1 * jax.random.normal(g1, (1, d_model), jnp.float32),
            ln1_b=0.1 * jax.random.normal(g2, (1, d_model), jnp.float32),
            ln2_g=1.0 + 0.1 * jax.random.normal(g3, (1, d_model), jnp.float32),
            ln2_b=0.1 * jax.random.normal(g4, (1, d_model), jnp.float32),
            w_qkv=w_qkv, b_qkv=b_qkv, w_out=w_out, b_out=b_out,
            w1=w1, b1=b1, w2=w2, b2=b2))
    return dict(w_emb=w_emb, b_emb=b_emb, pe=build_pe_table(d_model, max_len),
                w_proj=w_proj_col.T, b_proj=b_proj, layers=layers)


def _layer_norm_ref(x, g, b, eps=_LN_EPS):
    mu = jnp.mean(x, axis=-1, keepdims=True)
    var = jnp.mean(jnp.square(x - mu), axis=-1, keepdims=True)
    return (x - mu) / jnp.sqrt(var + eps) * g + b


def transformer_encoder_ref(src, params, *, nhead):
    """Pure-JAX reference (same math as the PyTorch module in eval mode)."""
    B, S, _ = src.shape
    D = params["w_emb"].shape[1]
    dh = D // nhead
    h = (src @ params["w_emb"] + params["b_emb"][0]) * math.sqrt(D)
    h = h + params["pe"][:S][None, :, :]
    for lyr in params["layers"]:
        hn = _layer_norm_ref(h, lyr["ln1_g"][0], lyr["ln1_b"][0])
        qkv = hn @ lyr["w_qkv"] + lyr["b_qkv"][0]
        q, k, v = jnp.split(qkv, 3, axis=-1)
        q = q.reshape(B, S, nhead, dh).transpose(0, 2, 1, 3)
        k = k.reshape(B, S, nhead, dh).transpose(0, 2, 1, 3)
        v = v.reshape(B, S, nhead, dh).transpose(0, 2, 1, 3)
        s = jnp.einsum("bhqd,bhkd->bhqk", q, k) / math.sqrt(dh)
        p = jax.nn.softmax(s, axis=-1)
        a = jnp.einsum("bhqk,bhkd->bhqd", p, v).transpose(0, 2, 1, 3).reshape(B, S, D)
        h = h + a @ lyr["w_out"] + lyr["b_out"][0]
        hn = _layer_norm_ref(h, lyr["ln2_g"][0], lyr["ln2_b"][0])
        f = jnp.maximum(hn @ lyr["w1"] + lyr["b1"][0], 0.0)
        h = h + f @ lyr["w2"] + lyr["b2"][0]
    last = h[:, -1, :]
    pred = last @ params["w_proj"].T + params["b_proj"][0]
    return pred[:, 0]


if __name__ == "__main__":
    key = jax.random.PRNGKey(0)
    B, S, input_dim = 2, 8, 16
    d_model, nhead, num_layers, dim_feedforward = 32, 4, 2, 64

    kx, kp = jax.random.split(key)
    src = jax.random.normal(kx, (B, S, input_dim), dtype=jnp.float32)
    params = init_params(kp, input_dim=input_dim, d_model=d_model,
                         num_layers=num_layers, dim_feedforward=dim_feedforward)

    out = transformer_encoder_forward(src, params, nhead=nhead)
    out = jax.block_until_ready(out)

    ref = transformer_encoder_ref(src, params, nhead=nhead)
    assert out.shape == (B,), out.shape
    # bf16 MXU operands (+ approx EUP reciprocal in softmax) vs the f32 reference -> looser tol.
    assert jnp.allclose(out, ref, atol=5e-2, rtol=5e-2), (out, ref)

    print("KERNEL_OK")
</pallas_src>

<mosaic_0001>
module attributes {stable_mosaic.version = 11 : i64} {
  func.func @_embed_pe_ln_qkv_kernel(%arg0: i32, %arg1: i32, %arg2: memref<8x16xf32, #tpu.memory_space<vmem>>, %arg3: memref<16x32xf32, #tpu.memory_space<vmem>>, %arg4: memref<1x32xf32, #tpu.memory_space<vmem>>, %arg5: memref<8x32xf32, #tpu.memory_space<vmem>>, %arg6: memref<1x32xf32, #tpu.memory_space<vmem>>, %arg7: memref<1x32xf32, #tpu.memory_space<vmem>>, %arg8: memref<32x96xf32, #tpu.memory_space<vmem>>, %arg9: memref<1x96xf32, #tpu.memory_space<vmem>>, %arg10: memref<8x32xf32, #tpu.memory_space<vmem>>, %arg11: memref<8x96xf32, #tpu.memory_space<vmem>>) attributes {dimension_semantics = [#tpu.dimension_semantics<parallel>, #tpu.dimension_semantics<parallel>], iteration_bounds = array<i64: 1, 2>, scalar_prefetch = 0 : i64, scratch_operands = 0 : i64, tpu.core_type = #tpu.core_type<tc>, window_params = [{transform_indices = @transform_0, window_bounds = array<i64: 8, 16>}, {pipeline_mode = #tpu.pipeline_mode<synchronous>, transform_indices = @transform_1, window_bounds = array<i64: 16, 32>}, {pipeline_mode = #tpu.pipeline_mode<synchronous>, transform_indices = @transform_2, window_bounds = array<i64: 1, 32>}, {transform_indices = @transform_3, window_bounds = array<i64: 8, 32>}, {pipeline_mode = #tpu.pipeline_mode<synchronous>, transform_indices = @transform_4, window_bounds = array<i64: 1, 32>}, {pipeline_mode = #tpu.pipeline_mode<synchronous>, transform_indices = @transform_5, window_bounds = array<i64: 1, 32>}, {pipeline_mode = #tpu.pipeline_mode<synchronous>, transform_indices = @transform_6, window_bounds = array<i64: 32, 96>}, {pipeline_mode = #tpu.pipeline_mode<synchronous>, transform_indices = @transform_7, window_bounds = array<i64: 1, 96>}, {transform_indices = @transform_8, window_bounds = array<i64: 8, 32>}, {transform_indices = @transform_9, window_bounds = array<i64: 8, 96>}]} {
    %c0 = arith.constant 0 : index
    %c0_0 = arith.constant 0 : index
    %0 = vector.load %arg2[%c0, %c0_0] : memref<8x16xf32, #tpu.memory_space<vmem>>, vector<8x16xf32>
    %1 = arith.truncf %0 : vector<8x16xf32> to vector<8x16xbf16>
    %c0_1 = arith.constant 0 : index
    %c0_2 = arith.constant 0 : index
    %2 = vector.load %arg3[%c0_1, %c0_2] : memref<16x32xf32, #tpu.memory_space<vmem>>, vector<16x32xf32>
    %3 = arith.truncf %2 : vector<16x32xf32> to vector<16x32xbf16>
    %cst = arith.constant dense<0.000000e+00> : vector<8x32xf32>
    %4 = tpu.matmul %1, %3, %cst {dimension_numbers = #tpu.dot_dimension_numbers<[1], [0], [0], [1], [0, 0, 1, 1], [], []>} : vector<8x16xbf16>, vector<16x32xbf16>, vector<8x32xf32> -> vector<8x32xf32>
    %c0_3 = arith.constant 0 : index
    %c0_4 = arith.constant 0 : index
    %5 = vector.load %arg4[%c0_3, %c0_4] : memref<1x32xf32, #tpu.memory_space<vmem>>, vector<1x32xf32>
    %6 = vector.broadcast %5 : vector<1x32xf32> to vector<8x32xf32>
    %7 = arith.addf %4, %6 : vector<8x32xf32>
    %c0_5 = arith.constant 0 : index
    %c0_6 = arith.constant 0 : index
    %8 = vector.load %arg5[%c0_5, %c0_6] : memref<8x32xf32, #tpu.memory_space<vmem>>, vector<8x32xf32>
    %9 = arith.addf %7, %8 : vector<8x32xf32>
    %c0_7 = arith.constant 0 : index
    %c0_8 = arith.constant 0 : index
    %10 = vector.load %arg10[%c0_7, %c0_8] : memref<8x32xf32, #tpu.memory_space<vmem>>, vector<8x32xf32>
    tpu.vector_store %arg10[%c0_7, %c0_8], %9 {strides = array<i32>} : memref<8x32xf32, #tpu.memory_space<vmem>>, vector<8x32xf32>,
    %cst_9 = arith.constant dense<0.000000e+00> : vector<8xf32>
    %11 = vector.multi_reduction <add>, %9, %cst_9 [1] : vector<8x32xf32> to vector<8xf32>
    %12 = vector.shape_cast %11 : vector<8xf32> to vector<8x1xf32>
    %cst_10 = arith.constant 3.200000e+01 : f32
    %13 = vector.broadcast %cst_10 : f32 to vector<8x1xf32>
    %14 = arith.divf %12, %13 : vector<8x1xf32>
    %15 = vector.broadcast %14 : vector<8x1xf32> to vector<8x32xf32>
    %16 = arith.subf %9, %15 : vector<8x32xf32>
    %17 = arith.mulf %16, %16 : vector<8x32xf32>
    %cst_11 = arith.constant dense<0.000000e+00> : vector<8xf32>
    %18 = vector.multi_reduction <add>, %17, %cst_11 [1] : vector<8x32xf32> to vector<8xf32>
    %19 = vector.shape_cast %18 : vector<8xf32> to vector<8x1xf32>
    %cst_12 = arith.constant 3.200000e+01 : f32
    %20 = vector.broadcast %cst_12 : f32 to vector<8x1xf32>
    %21 = arith.divf %19, %20 : vector<8x1xf32>
    %cst_13 = arith.constant 9.99999974E-6 : f32
    %22 = vector.broadcast %cst_13 : f32 to vector<8x1xf32>
    %23 = arith.addf %21, %22 : vector<8x1xf32>
    %24 = math.rsqrt %23 : vector<8x1xf32>
    %25 = vector.broadcast %24 : vector<8x1xf32> to vector<8x32xf32>
    %26 = arith.mulf %16, %25 : vector<8x32xf32>
    %c0_14 = arith.constant 0 : index
    %c0_15 = arith.constant 0 : index
    %27 = vector.load %arg6[%c0_14, %c0_15] : memref<1x32xf32, #tpu.memory_space<vmem>>, vector<1x32xf32>
    %28 = vector.broadcast %27 : vector<1x32xf32> to vector<8x32xf32>
    %29 = arith.mulf %26, %28 : vector<8x32xf32>
    %c0_16 = arith.constant 0 : index
    %c0_17 = arith.constant 0 : index
    %30 = vector.load %arg7[%c0_16, %c0_17] : memref<1x32xf32, #tpu.memory_space<vmem>>, vector<1x32xf32>
    %31 = vector.broadcast %30 : vector<1x32xf32> to vector<8x32xf32>
    %32 = arith.addf %29, %31 : vector<8x32xf32>
    %33 = arith.truncf %32 : vector<8x32xf32> to vector<8x32xbf16>
    %c0_18 = arith.constant 0 : index
    %c0_19 = arith.constant 0 : index
    %34 = vector.load %arg8[%c0_18, %c0_19] : memref<32x96xf32, #tpu.memory_space<vmem>>, vector<32x96xf32>
    %35 = arith.truncf %34 : vector<32x96xf32> to vector<32x96xbf16>
    %cst_20 = arith.constant dense<0.000000e+00> : vector<8x96xf32>
    %36 = tpu.matmul %33, %35, %cst_20 {dimension_numbers = #tpu.dot_dimension_numbers<[1], [0], [0], [1], [0, 0, 1, 1], [], []>} : vector<8x32xbf16>, vector<32x96xbf16>, vector<8x96xf32> -> vector<8x96xf32>
    %c0_21 = arith.constant 0 : index
    %c0_22 = arith.constant 0 : index
    %37 = vector.load %arg9[%c0_21, %c0_22] : memref<1x96xf32, #tpu.memory_space<vmem>>, vector<1x96xf32>
    %38 = vector.broadcast %37 : vector<1x96xf32> to vector<8x96xf32>
    %39 = arith.addf %36, %38 : vector<8x96xf32>
    %c0_23 = arith.constant 0 : index
    %c0_24 = arith.constant 0 : index
    %40 = vector.load %arg11[%c0_23, %c0_24] : memref<8x96xf32, #tpu.memory_space<vmem>>, vector<8x96xf32>
    tpu.vector_store %arg11[%c0_23, %c0_24], %39 {strides = array<i32>} : memref<8x96xf32, #tpu.memory_space<vmem>>, vector<8x96xf32>,
    return
  }
  func.func @transform_0(%arg0: i32, %arg1: i32) -> (i32, i32) {
    %c1_i32 = arith.constant 1 : i32
    %0 = arith.muli %arg1, %c1_i32 : i32
    %1 = arith.addi %0, %arg0 : i32
    %c0_i32 = arith.constant 0 : i32
    %c0_i32_0 = arith.constant 0 : i32
    return %1, %c0_i32 : i32, i32
  }
  func.func @transform_1(%arg0: i32, %arg1: i32) -> (i32, i32) {
    %c0_i32 = arith.constant 0 : i32
    %c0_i32_0 = arith.constant 0 : i32
    %c0_i32_1 = arith.constant 0 : i32
    return %c0_i32, %c0_i32_0 : i32, i32
  }
  func.func @transform_2(%arg0: i32, %arg1: i32) -> (i32, i32) {
    %c0_i32 = arith.constant 0 : i32
    %c0_i32_0 = arith.constant 0 : i32
    %c0_i32_1 = arith.constant 0 : i32
    return %c0_i32, %c0_i32_0 : i32, i32
  }
  func.func @transform_3(%arg0: i32, %arg1: i32) -> (i32, i32) {
    %c0_i32 = arith.constant 0 : i32
    %c0_i32_0 = arith.constant 0 : i32
    return %arg0, %c0_i32 : i32, i32
  }
  func.func @transform_4(%arg0: i32, %arg1: i32) -> (i32, i32) {
    %c0_i32 = arith.constant 0 : i32
    %c0_i32_0 = arith.constant 0 : i32
    %c0_i32_1 = arith.constant 0 : i32
    return %c0_i32, %c0_i32_0 : i32, i32
  }
  func.func @transform_5(%arg0: i32, %arg1: i32) -> (i32, i32) {
    %c0_i32 = arith.constant 0 : i32
    %c0_i32_0 = arith.constant 0 : i32
    %c0_i32_1 = arith.constant 0 : i32
    return %c0_i32, %c0_i32_0 : i32, i32
  }
  func.func @transform_6(%arg0: i32, %arg1: i32) -> (i32, i32) {
    %c0_i32 = arith.constant 0 : i32
    %c0_i32_0 = arith.constant 0 : i32
    %c0_i32_1 = arith.constant 0 : i32
    return %c0_i32, %c0_i32_0 : i32, i32
  }
  func.func @transform_7(%arg0: i32, %arg1: i32) -> (i32, i32) {
    %c0_i32 = arith.constant 0 : i32
    %c0_i32_0 = arith.constant 0 : i32
    %c0_i32_1 = arith.constant 0 : i32
    return %c0_i32, %c0_i32_0 : i32, i32
  }
  func.func @transform_8(%arg0: i32, %arg1: i32) -> (i32, i32) {
    %c1_i32 = arith.constant 1 : i32
    %0 = arith.muli %arg1, %c1_i32 : i32
    %1 = arith.addi %0, %arg0 : i32
    %c0_i32 = arith.constant 0 : i32
    %c0_i32_0 = arith.constant 0 : i32
    return %1, %c0_i32 : i32, i32
  }
  func.func @transform_9(%arg0: i32, %arg1: i32) -> (i32, i32) {
    %c1_i32 = arith.constant 1 : i32
    %0 = arith.muli %arg1, %c1_i32 : i32
    %1 = arith.addi %0, %arg0 : i32
    %c0_i32 = arith.constant 0 : i32
    %c0_i32_0 = arith.constant 0 : i32
    return %1, %c0_i32 : i32, i32
  }
}

</mosaic_0001>

<llo_original>
// kernel: tpu_custom_call.1
$region0: #{tpu_custom_call.1}
  #allocation0 [shape = 'u32[]', space=smem, size = 0x4, offset = 0x4, fixed_abs, tag = 'smem constant byte address 0x4 - core index']
  #allocation1 [shape = 'u32[144,128]{1,0:T(1,128)}', space=vmem, size = 0x12000, scoped, tag = 'internal scratch']
  %s0 = inlined_call_operand.vmem [shape: f32[16,16], index: 0, kind: input, shape index: {}]
  %s1 = inlined_call_operand.vmem [shape: f32[16,32], index: 1, kind: input, shape index: {}]
  %s2 = inlined_call_operand.vmem [shape: f32[1,32], index: 2, kind: input, shape index: {}]
  %s3 = inlined_call_operand.vmem [shape: f32[5000,32], index: 3, kind: input, shape index: {}]
  %s4 = inlined_call_operand.vmem [shape: f32[1,32], index: 4, kind: input, shape index: {}]
  %s5 = inlined_call_operand.vmem [shape: f32[1,32], index: 5, kind: input, shape index: {}]
  %s6 = inlined_call_operand.vmem [shape: f32[32,96], index: 6, kind: input, shape index: {}]
  %s7 = inlined_call_operand.vmem [shape: f32[1,96], index: 7, kind: input, shape index: {}]
  %s8 = inlined_call_operand.hbm [shape: f32[16,32], index: 8, kind: output, shape index: {0}]
  %s9 = inlined_call_operand.hbm [shape: f32[16,96], index: 9, kind: output, shape index: {1}]
  %10 = xla_tuple %s8, %s9
  %s11 = sld [smem:[#allocation0]]
  $region73: #{tpu_custom_call.1} parent=0
    _
  %s13 = ssub.s32 1, %s11
  %s14 = scalar_select 0, %s13, %s11
  $region1: #{tpu_custom_call.1} parent=0
    #allocation2 [shape = 'u8[8192]{0}', space=vmem, size = 0x2000, scoped, tag = 'output window, operand 0']
    #allocation3 [shape = 's32[2]{0}', space=sflag, size = 0x8, scoped, tag = 'scoped memory for tpu_custom_call.1']
    #allocation4 [shape = 'u8[8192]{0}', space=vmem, size = 0x2000, scoped, tag = 'output window, operand 1']
    #allocation5 [shape = 's32[2]{0}', space=sflag, size = 0x8, scoped, tag = 'scoped memory for tpu_custom_call.1']
    %15 = vsyncpa [#allocation3], 0
    %s16 = scalar_lea.sflag [#allocation3], 1
    %17 = vsyncpa %s16, 0
    %18 = vsyncpa [#allocation5], 0
    %s19 = scalar_lea.sflag [#allocation5], 1
    %20 = vsyncpa %s19, 0
    loop: start=0, step=1, limit=4
    $region2: #{tpu_custom_call.1} parent=1 // loop_pre_header
      _
    $region3: #{tpu_custom_call.1} parent=1 // loop_header
      %s22 = sphi 0, %s26
      %p23 = scmp.ge.s32.totalorder %s22, 4
      %s29 = sphi 0, %s41
      %s30 = sphi 0, %s37
      %s31 = sphi 0, %s29
      %s32 = sphi 0, %s30
      %s33 = sphi 0, %s31
      %s34 = sphi 0, %s32
      %s46 = sphi 0, %s48
      %s49 = sphi 0, %s46
      %s50 = sphi 0, %s49
      %s66 = sphi 0, %s50
      %s70 = sphi 0, %s70
      %s72 = sphi 0, %s70
      %s73 = sphi 0, %s72
      %s87 = sphi 0, %s73
      %s91 = sphi 0, %s91
      %s93 = sphi 0, %s91
      %s94 = sphi 0, %s93
      %s108 = sphi 0, %s94
      %s114 = sphi 0, %s116
      %s117 = sphi 0, %s114
      %s118 = sphi 0, %s117
      %s134 = sphi 0, %s118
      %s138 = sphi 0, %s138
      %s140 = sphi 0, %s138
      %s141 = sphi 0, %s140
      %s155 = sphi 0, %s141
      %s159 = sphi 0, %s159
      %s161 = sphi 0, %s159
      %s162 = sphi 0, %s161
      %s176 = sphi 0, %s162
      %s180 = sphi 0, %s180
      %s182 = sphi 0, %s180
      %s183 = sphi 0, %s182
      %s197 = sphi 0, %s183
      %s201 = sphi 0, %s201
      %s203 = sphi 0, %s201
      %s204 = sphi 0, %s203
      %s218 = sphi 0, %s204
      %s226 = sphi 0, %s228
      %s229 = sphi 0, %s226
      %s230 = sphi 0, %s229
      %s246 = sphi 0, %s230
      %s254 = sphi 0, %s256
      %s257 = sphi 0, %s254
      %s258 = sphi 0, %s257
      %s274 = sphi 0, %s258
    $region4: #{tpu_custom_call.1} parent=1 // loop_header_branch
      %25 = sbr.rel (%p23) target = $region8
    $region5: #{tpu_custom_call.1} parent=1 // loop_body
      %s27 = ssub.s32 %s22, 1
      %s28 = ssub.s32 %s22, 2
      %s35 = sadd.s32 1, %s30
      %p36 = scmp.ge.s32.totalorder %s35, 2
      %s37 = scalar_select %p36, 0, %s35
      %s38 = sadd.s32 1, %s29
      %s39 = scalar_select %p36, %s38, %s29
      %p40 = scmp.ge.s32.totalorder %s39, 1
      %s41 = scalar_select %p40, 0, %s39
      %s42 = sadd.s32 %s30, %s29
      %s43 = sadd.s32 %s37, %s41
      %s44 = ssub.s32 %s42, %s43
      %p45 = scmp.eq.s32.totalorder %s44, 0
      %s47 = sadd.s32 %s46, 1
      %s48 = scalar_select %p45, %s46, %s47
      %p51 = pneg %p45
      %p52 = scmp.eq.s32.totalorder %s22, 1
      %p53 = por %p51, %p52
      %p54 = scmp.ne.s32.totalorder %s46, %s49
      %p55 = scmp.eq.s32.totalorder %s22, 0
      %p56 = por %p54, %p55
      %p57 = scmp.ne.s32.totalorder %s46, %s49
      %p58 = scmp.eq.s32.totalorder %s27, 1
      %p59 = por %p57, %p58
      %p60 = scmp.ne.s32.totalorder %s49, %s50
      %p61 = scmp.eq.s32.totalorder %s27, 0
      %p62 = por %p60, %p61
      %p63 = scmp.ne.s32.totalorder %s49, %s50
      %p64 = scmp.eq.s32.totalorder %s28, 1
      %p65 = por %p63, %p64
      %p67 = scmp.ne.s32.totalorder %s50, %s66
      %p68 = scmp.eq.s32.totalorder %s28, 0
      %p69 = por %p67, %p68
      %s71 = sadd.s32 %s70, 1
      %p74 = scmp.eq.s32.totalorder %s22, 1
      %p75 = scmp.ne.s32.totalorder %s70, %s72
      %p76 = scmp.eq.s32.totalorder %s22, 0
      %p77 = por %p75, %p76
      %p78 = scmp.ne.s32.totalorder %s70, %s72
      %p79 = scmp.eq.s32.totalorder %s27, 1
      %p80 = por %p78, %p79
      %p81 = scmp.ne.s32.totalorder %s72, %s73
      %p82 = scmp.eq.s32.totalorder %s27, 0
      %p83 = por %p81, %p82
      %p84 = scmp.ne.s32.totalorder %s72, %s73
      %p85 = scmp.eq.s32.totalorder %s28, 1
      %p86 = por %p84, %p85
      %p88 = scmp.ne.s32.totalorder %s73, %s87
      %p89 = scmp.eq.s32.totalorder %s28, 0
      %p90 = por %p88, %p89
      %s92 = sadd.s32 %s91, 1
      %p95 = scmp.eq.s32.totalorder %s22, 1
      %p96 = scmp.ne.s32.totalorder %s91, %s93
      %p97 = scmp.eq.s32.totalorder %s22, 0
      %p98 = por %p96, %p97
      %p99 = scmp.ne.s32.totalorder %s91, %s93
      %p100 = scmp.eq.s32.totalorder %s27, 1
      %p101 = por %p99, %p100
      %p102 = scmp.ne.s32.totalorder %s93, %s94
      %p103 = scmp.eq.s32.totalorder %s27, 0
      %p104 = por %p102, %p103
      %p105 = scmp.ne.s32.totalorder %s93, %s94
      %p106 = scmp.eq.s32.totalorder %s28, 1
      %p107 = por %p105, %p106
      %p109 = scmp.ne.s32.totalorder %s94, %s108
      %p110 = scmp.eq.s32.totalorder %s28, 0
      %p111 = por %p109, %p110
      %s112 = ssub.s32 %s29, %s41
      %p113 = scmp.eq.s32.totalorder %s112, 0
      %s115 = sadd.s32 %s114, 1
      %s116 = scalar_select %p113, %s114, %s115
      %p119 = pneg %p113
      %p120 = scmp.eq.s32.totalorder %s22, 1
      %p121 = por %p119, %p120
      %p122 = scmp.ne.s32.totalorder %s114, %s117
      %p123 = scmp.eq.s32.totalorder %s22, 0
      %p124 = por %p122, %p123
      %p125 = scmp.ne.s32.totalorder %s114, %s117
      %p126 = scmp.eq.s32.totalorder %s27, 1
      %p127 = por %p125, %p126
      %p128 = scmp.ne.s32.totalorder %s117, %s118
      %p129 = scmp.eq.s32.totalorder %s27, 0
      %p130 = por %p128, %p129
      %p131 = scmp.ne.s32.totalorder %s117, %s118
      %p132 = scmp.eq.s32.totalorder %s28, 1
      %p133 = por %p131, %p132
      %p135 = scmp.ne.s32.totalorder %s118, %s134
      %p136 = scmp.eq.s32.totalorder %s28, 0
      %p137 = por %p135, %p136
      %s139 = sadd.s32 %s138, 1
      %p142 = scmp.eq.s32.totalorder %s22, 1
      %p143 = scmp.ne.s32.totalorder %s138, %s140
      %p144 = scmp.eq.s32.totalorder %s22, 0
      %p145 = por %p143, %p144
      %p146 = scmp.ne.s32.totalorder %s138, %s140
      %p147 = scmp.eq.s32.totalorder %s27, 1
      %p148 = por %p146, %p147
      %p149 = scmp.ne.s32.totalorder %s140, %s141
      %p150 = scmp.eq.s32.totalorder %s27, 0
      %p151 = por %p149, %p150
      %p152 = scmp.ne.s32.totalorder %s140, %s141
      %p153 = scmp.eq.s32.totalorder %s28, 1
      %p154 = por %p152, %p153
      %p156 = scmp.ne.s32.totalorder %s141, %s155
      %p157 = scmp.eq.s32.totalorder %s28, 0
      %p158 = por %p156, %p157
      %s160 = sadd.s32 %s159, 1
      %p163 = scmp.eq.s32.totalorder %s22, 1
      %p164 = scmp.ne.s32.totalorder %s159, %s161
      %p165 = scmp.eq.s32.totalorder %s22, 0
      %p166 = por %p164, %p165
      %p167 = scmp.ne.s32.totalorder %s159, %s161
      %p168 = scmp.eq.s32.totalorder %s27, 1
      %p169 = por %p167, %p168
      %p170 = scmp.ne.s32.totalorder %s161, %s162
      %p171 = scmp.eq.s32.totalorder %s27, 0
      %p172 = por %p170, %p171
      %p173 = scmp.ne.s32.totalorder %s161, %s162
      %p174 = scmp.eq.s32.totalorder %s28, 1
      %p175 = por %p173, %p174
      %p177 = scmp.ne.s32.totalorder %s162, %s176
      %p178 = scmp.eq.s32.totalorder %s28, 0
      %p179 = por %p177, %p178
      %s181 = sadd.s32 %s180, 1
      %p184 = scmp.eq.s32.totalorder %s22, 1
      %p185 = scmp.ne.s32.totalorder %s180, %s182
      %p186 = scmp.eq.s32.totalorder %s22, 0
      %p187 = por %p185, %p186
      %p188 = scmp.ne.s32.totalorder %s180, %s182
      %p189 = scmp.eq.s32.totalorder %s27, 1
      %p190 = por %p188, %p189
      %p191 = scmp.ne.s32.totalorder %s182, %s183
      %p192 = scmp.eq.s32.totalorder %s27, 0
      %p193 = por %p191, %p192
      %p194 = scmp.ne.s32.totalorder %s182, %s183
      %p195 = scmp.eq.s32.totalorder %s28, 1
      %p196 = por %p194, %p195
      %p198 = scmp.ne.s32.totalorder %s183, %s197
      %p199 = scmp.eq.s32.totalorder %s28, 0
      %p200 = por %p198, %p199
      %s202 = sadd.s32 %s201, 1
      %p205 = scmp.eq.s32.totalorder %s22, 1
      %p206 = scmp.ne.s32.totalorder %s201, %s203
      %p207 = scmp.eq.s32.totalorder %s22, 0
      %p208 = por %p206, %p207
      %p209 = scmp.ne.s32.totalorder %s201, %s203
      %p210 = scmp.eq.s32.totalorder %s27, 1
      %p211 = por %p209, %p210
      %p212 = scmp.ne.s32.totalorder %s203, %s204
      %p213 = scmp.eq.s32.totalorder %s27, 0
      %p214 = por %p212, %p213
      %p215 = scmp.ne.s32.totalorder %s203, %s204
      %p216 = scmp.eq.s32.totalorder %s28, 1
      %p217 = por %p215, %p216
      %p219 = scmp.ne.s32.totalorder %s204, %s218
      %p220 = scmp.eq.s32.totalorder %s28, 0
      %p221 = por %p219, %p220
      %s222 = sadd.s32 %s30, %s29
      %s223 = sadd.s32 %s37, %s41
      %s224 = ssub.s32 %s222, %s223
      %p225 = scmp.eq.s32.totalorder %s224, 0
      %s227 = sadd.s32 %s226, 1
      %s228 = scalar_select %p225, %s226, %s227
      %p231 = pneg %p225
      %p232 = scmp.eq.s32.totalorder %s22, 1
      %p233 = por %p231, %p232
      %p234 = scmp.ne.s32.totalorder %s226, %s229
      %p235 = scmp.eq.s32.totalorder %s22, 0
      %p236 = por %p234, %p235
      %p237 = scmp.ne.s32.totalorder %s226, %s229
      %p238 = scmp.eq.s32.totalorder %s27, 1
      %p239 = por %p237, %p238
      %p240 = scmp.ne.s32.totalorder %s229, %s230
      %p241 = scmp.eq.s32.totalorder %s27, 0
      %p242 = por %p240, %p241
      %p243 = scmp.ne.s32.totalorder %s229, %s230
      %p244 = scmp.eq.s32.totalorder %s28, 1
      %p245 = por %p243, %p244
      %p247 = scmp.ne.s32.totalorder %s230, %s246
      %p248 = scmp.eq.s32.totalorder %s28, 0
      %p249 = por %p247, %p248
      %s250 = sadd.s32 %s30, %s29
      %s251 = sadd.s32 %s37, %s41
      %s252 = ssub.s32 %s250, %s251
      %p253 = scmp.eq.s32.totalorder %s252, 0
      %s255 = sadd.s32 %s254, 1
      %s256 = scalar_select %p253, %s254, %s255
      %p259 = pneg %p253
      %p260 = scmp.eq.s32.totalorder %s22, 1
      %p261 = por %p259, %p260
      %p262 = scmp.ne.s32.totalorder %s254, %s257
      %p263 = scmp.eq.s32.totalorder %s22, 0
      %p264 = por %p262, %p263
      %p265 = scmp.ne.s32.totalorder %s254, %s257
      %p266 = scmp.eq.s32.totalorder %s27, 1
      %p267 = por %p265, %p266
      %p268 = scmp.ne.s32.totalorder %s257, %s258
      %p269 = scmp.eq.s32.totalorder %s27, 0
      %p270 = por %p268, %p269
      %p271 = scmp.ne.s32.totalorder %s257, %s258
      %p272 = scmp.eq.s32.totalorder %s28, 1
      %p273 = por %p271, %p272
      %p275 = scmp.ne.s32.totalorder %s258, %s274
      %p276 = scmp.eq.s32.totalorder %s28, 0
      %p277 = por %p275, %p276
      %p278 = scmp.le.s32.totalorder 1, %s22
      %p279 = scmp.lt.s32.totalorder %s22, 3
      %p280 = pnand %p278, %p279
      %p281 = pneg %p280
      // Predicated region
      $region9: #{tpu_custom_call.1} parent=5 // pred_check
        _
      $region10: #{tpu_custom_call.1} parent=5 // pred_check_branch
        %283 = sbr.rel (%p280) target = $region12
      $region11: #{tpu_custom_call.1} parent=5 // pred_region
        %s284 = ssub.s32 %s22, 1
        // Predicated region
        $region13: #{tpu_custom_call.1} parent=11 // pred_check
          %p285 = pneg %p83
        $region14: #{tpu_custom_call.1} parent=11 // pred_check_branch
          %287 = sbr.rel (%p285) target = $region16
        $region15: #{tpu_custom_call.1} parent=11 // pred_region
          _
        $region16: #{tpu_custom_call.1} parent=11 // pred_fallthru
          _
        // Predicated region
        $region17: #{tpu_custom_call.1} parent=11 // pred_check
          %p288 = pneg %p104
        $region18: #{tpu_custom_call.1} parent=11 // pred_check_branch
          %290 = sbr.rel (%p288) target = $region20
        $region19: #{tpu_custom_call.1} parent=11 // pred_region
          _
        $region20: #{tpu_custom_call.1} parent=11 // pred_fallthru
          _
        // Predicated region
        $region21: #{tpu_custom_call.1} parent=11 // pred_check
          %p291 = pneg %p130
        $region22: #{tpu_custom_call.1} parent=11 // pred_check_branch
          %293 = sbr.rel (%p291) target = $region24
        $region23: #{tpu_custom_call.1} parent=11 // pred_region
          %p294 = scmp.lt.s32.totalorder %s31, 624
          %s295 = scalar_select %p294, %s31, 624
          %s296 = smul.addr %s295, 8
          %s297 = scalar_lea.vmem %s3, %s296
        $region24: #{tpu_custom_call.1} parent=11 // pred_fallthru
          _
        // Predicated region
        $region25: #{tpu_custom_call.1} parent=11 // pred_check
          %p298 = pneg %p151
        $region26: #{tpu_custom_call.1} parent=11 // pred_check_branch
          %300 = sbr.rel (%p298) target = $region28
        $region27: #{tpu_custom_call.1} parent=11 // pred_region
          _
        $region28: #{tpu_custom_call.1} parent=11 // pred_fallthru
          _
        // Predicated region
        $region29: #{tpu_custom_call.1} parent=11 // pred_check
          %p301 = pneg %p172
        $region30: #{tpu_custom_call.1} parent=11 // pred_check_branch
          %303 = sbr.rel (%p301) target = $region32
        $region31: #{tpu_custom_call.1} parent=11 // pred_region
          _
        $region32: #{tpu_custom_call.1} parent=11 // pred_fallthru
          _
        // Predicated region
        $region33: #{tpu_custom_call.1} parent=11 // pred_check
          %p304 = pneg %p193
        $region34: #{tpu_custom_call.1} parent=11 // pred_check_branch
          %306 = sbr.rel (%p304) target = $region36
        $region35: #{tpu_custom_call.1} parent=11 // pred_region
          _
        $region36: #{tpu_custom_call.1} parent=11 // pred_fallthru
          _
        // Predicated region
        $region37: #{tpu_custom_call.1} parent=11 // pred_check
          %p307 = pneg %p214
        $region38: #{tpu_custom_call.1} parent=11 // pred_check_branch
          %309 = sbr.rel (%p307) target = $region40
        $region39: #{tpu_custom_call.1} parent=11 // pred_region
          _
        $region40: #{tpu_custom_call.1} parent=11 // pred_fallthru
          _
      $region12: #{tpu_custom_call.1} parent=5 // pred_fallthru
        _
      %p310 = scmp.lt.s32.totalorder %s22, 2
      // Predicated region
      $region41: #{tpu_custom_call.1} parent=5 // pred_check
        %p311 = pneg %p310
      $region42: #{tpu_custom_call.1} parent=5 // pred_check_branch
        %313 = sbr.rel (%p311) target = $region44
      $region43: #{tpu_custom_call.1} parent=5 // pred_region
        // Predicated region
        $region45: #{tpu_custom_call.1} parent=43 // pred_check
          %p314 = pneg %p56
        $region46: #{tpu_custom_call.1} parent=43 // pred_check_branch
          %316 = sbr.rel (%p314) target = $region48
        $region47: #{tpu_custom_call.1} parent=43 // pred_region
          %s317 = sadd.s32 %s30, %s29
          %p318 = scmp.lt.s32.totalorder %s317, 1
          %s319 = scalar_select %p318, %s317, 1
          %s320 = smul.addr %s319, 8
          %s321 = scalar_lea.vmem %s0, %s320
          %s322 = sadd.s32 %s30, %s29
        $region48: #{tpu_custom_call.1} parent=43 // pred_fallthru
          _
      $region44: #{tpu_custom_call.1} parent=5 // pred_fallthru
        _
      %p323 = scmp.le.s32.totalorder 1, %s22
      %p324 = scmp.lt.s32.totalorder %s22, 3
      %p325 = pnand %p323, %p324
      %p326 = pneg %p325
      // Predicated region
      $region49: #{tpu_custom_call.1} parent=5 // pred_check
        _
      $region50: #{tpu_custom_call.1} parent=5 // pred_check_branch
        %328 = sbr.rel (%p325) target = $region52
      $region51: #{tpu_custom_call.1} parent=5 // pred_region
        %s329 = ssub.s32 %s22, 1
        %s330 = sadd.s32 %s32, %s31
        %p331 = scmp.lt.s32.totalorder %s330, 1
        %s332 = scalar_select %p331, %s330, 1
        %s333 = smul.addr %s332, 8
        %s334 = scalar_lea.vmem %s0, %s333
        %p335 = pneg %p62
        %p336 = pneg %p59
        %p337 = pneg %p83
        %p338 = pneg %p80
        %p339 = pneg %p104
        %p340 = pneg %p101
        %p341 = scmp.lt.s32.totalorder %s31, 624
        %s342 = scalar_select %p341, %s31, 624
        %s343 = smul.addr %s342, 8
        %s344 = scalar_lea.vmem %s3, %s343
        %p345 = pneg %p130
        %p346 = pneg %p127
        %p347 = pneg %p151
        %p348 = pneg %p148
        %p349 = pneg %p172
        %p350 = pneg %p169
        %p351 = pneg %p193
        %p352 = pneg %p190
        %p353 = pneg %p214
        %p354 = pneg %p211
        %p355 = pneg %p242
        %p356 = pneg %p239
        %s357 = sand.u32 %s229, 1
        %s358 = scalar_lea.sflag [#allocation3], %s357
        %s359 = sand.u32 %s229, 1
        %s360 = smul.addr %s359, 8
        %s361 = scalar_lea.vmem [#allocation2], %s360
        %p362 = pneg %p270
        %p363 = pneg %p267
        %s364 = sand.u32 %s257, 1
        %s365 = scalar_lea.sflag [#allocation5], %s364
        %s366 = sand.u32 %s257, 1
        %s367 = smul.addr %s366, 8
        %s368 = scalar_lea.vmem [#allocation4], %s367
        %s369 = sadd.s32 %s32, %s31
        %p370 = scmp.lt.s32.totalorder %s369, 1
        %s371 = scalar_select %p370, %s369, 1
        %s372 = smul.addr %s371, 8
        %s373 = scalar_lea.vmem %s0, %s372
        %s374 = sadd.s32 %s32, %s31
        %p375 = scmp.lt.s32.totalorder %s31, 624
        %s376 = scalar_select %p375, %s31, 624
        %s377 = smul.addr %s376, 8
        %s378 = scalar_lea.vmem %s3, %s377
        %s379 = sadd.s32 %s32, %s31
        %s380 = sadd.s32 %s32, %s31
        %v382 = vld [vmem:[%s373] sm:$0xff]
        %v383 = vpack.c.bf16 %v382, %v382
        %v384 = vld [vmem:[%s1] sm:$0xff]
        %v385 = vld [vmem:[%s1 + $0x8] sm:$0xff]
        %v386 = vpack.c.bf16 %v385, %v384
        %v387 = vld [vmem:[%s2] sm:$0x1]
        %v389 = vlaneseq
        %v390 = vshrl.u32 %v389, 7
        %v391 = vsub.s32 0, %v390
        %v392 = vrot.slane %v387, %v391
        %vm394 = vcmask 130048
        %v396 = vsel %vm394, %v383, 0
        %398 = vmatprep.subr.bf16.mxu0 0
        %399 = vmatpush1.bf16.msra.mxu0 %v386
        %400 = vmatprep.subr.bf16.mxu0 0
        %401 = vmatpush1.bf16.msra.mxu0 0
        %402 = vmatprep.subr.bf16.mxu0 0
        %403 = vmatpush1.bf16.msra.mxu0 0
        %404 = vmatprep.subr.bf16.mxu0 0
        %405 = vmatpush1.bf16.msra.mxu0 0
        %406 = vmatprep.subr.bf16.mxu0 0
        %407 = vmatpush1.bf16.msra.mxu0 0
        %408 = vmatprep.subr.bf16.mxu0 0
        %409 = vmatpush1.bf16.msra.mxu0 0
        %410 = vmatprep.subr.bf16.mxu0 0
        %411 = vmatpush1.bf16.msra.mxu0 0
        %412 = vmatprep.subr.bf16.mxu0 0
        %413 = vmatpush1.bf16.msra.mxu0 0
        %414 = vmatprep.subr.bf16.mxu0 0
        %415 = vmatpush1.bf16.msra.mxu0 0
        %416 = vmatprep.subr.bf16.mxu0 0
        %417 = vmatpush1.bf16.msra.mxu0 0
        %418 = vmatprep.subr.bf16.mxu0 0
        %419 = vmatpush1.bf16.msra.mxu0 0
        %420 = vmatprep.subr.bf16.mxu0 0
        %421 = vmatpush1.bf16.msra.mxu0 0
        %422 = vmatprep.subr.bf16.mxu0 0
        %423 = vmatpush1.bf16.msra.mxu0 0
        %424 = vmatprep.subr.bf16.mxu0 0
        %425 = vmatpush1.bf16.msra.mxu0 0
        %426 = vmatprep.subr.bf16.mxu0 0
        %427 = vmatpush1.bf16.msra.mxu0 0
        %428 = vmatprep.subr.bf16.mxu0 0
        %429 = vmatpush1.bf16.msra.mxu0 0
        %430 = vmatprep.mubr.bf16.mxu0 0
        %431 = vmatmul.mubr.bf16.gmra.mrb[0].mxu0 %v396
        %v432 = vpop.f32.mrb[0].mxu0
        %v433 = vadd.f32 %v392, %v432
        %v434 = vpop.f32.mrb[0].mxu0
        %v435 = vpop.f32.mrb[0].mxu0
        %v436 = vpop.f32.mrb[0].mxu0
        %437 = vdwg.mxu0
        %v438 = vld [vmem:[%s378] sm:$0xff]
        %v439 = vadd.f32 %v433, %v438
        %vm440 = vcmask 261120
        %441 = vst.msk [vmem:[%s361] sm:$0xff] %vm440, %v439
        %v442 = vsel %vm440, %v439, 0.0
        %443 = vadd.xlane.f32.xlu0 %v442
        %v444 = vpop.xlane.xlu0 %443
        %v445 = vrcp.pop 32.0
        %v446 = vmul.f32 %v444, %v445
        %v447 = vsub.f32 %v439, %v446
        %v448 = vmul.f32 %v447, %v447
        %v449 = vsel %vm440, %v448, 0.0
        %450 = vadd.xlane.f32.xlu0 %v449
        %v451 = vpop.xlane.xlu0 %450
        %v452 = vmul.f32 %v451, %v445
        %v453 = vadd.f32 %v452, 1e-05
        %v454 = vrsqrt.pop %v453
        %v455 = vmul.f32 %v447, %v454
        %v456 = vld [vmem:[%s4] sm:$0x1]
        %v458 = vlaneseq
        %v459 = vshrl.u32 %v458, 7
        %v460 = vsub.s32 0, %v459
        %v461 = vrot.slane %v456, %v460
        %v463 = vmul.f32 %v455, %v461
        %v464 = vld [vmem:[%s5] sm:$0x1]
        %v466 = vlaneseq
        %v467 = vshrl.u32 %v466, 7
        %v468 = vsub.s32 0, %v467
        %v469 = vrot.slane %v464, %v468
        %v471 = vadd.f32 %v463, %v469
        %v472 = vpack.c.bf16 %v471, %v471
        %v473 = vld [vmem:[%s6] sm:$0xff]
        %v474 = vld [vmem:[%s6 + $0x8] sm:$0xff]
        %v475 = vld [vmem:[%s6 + $0x10] sm:$0xff]
        %v476 = vld [vmem:[%s6 + $0x18] sm:$0xff]
        %v477 = vpack.c.bf16 %v474, %v473
        %v478 = vpack.c.bf16 %v476, %v475
        %v479 = vld [vmem:[%s7] sm:$0x1]
        %v481 = vlaneseq
        %v482 = vshrl.u32 %v481, 7
        %v483 = vsub.s32 0, %v482
        %v484 = vrot.slane %v479, %v483
        %v487 = vsel %vm440, %v472, 0
        %489 = vmatprep.subr.bf16.mxu0 0
        %490 = vmatpush1.bf16.msra.mxu0 %v477
        %491 = vmatprep.subr.bf16.mxu0 0
        %492 = vmatpush1.bf16.msra.mxu0 %v478
        %493 = vmatprep.subr.bf16.mxu0 0
        %494 = vmatpush1.bf16.msra.mxu0 0
        %495 = vmatprep.subr.bf16.mxu0 0
        %496 = vmatpush1.bf16.msra.mxu0 0
        %497 = vmatprep.subr.bf16.mxu0 0
        %498 = vmatpush1.bf16.msra.mxu0 0
        %499 = vmatprep.subr.bf16.mxu0 0
        %500 = vmatpush1.bf16.msra.mxu0 0
        %501 = vmatprep.subr.bf16.mxu0 0
        %502 = vmatpush1.bf16.msra.mxu0 0
        %503 = vmatprep.subr.bf16.mxu0 0
        %504 = vmatpush1.bf16.msra.mxu0 0
        %505 = vmatprep.subr.bf16.mxu0 0
        %506 = vmatpush1.bf16.msra.mxu0 0
        %507 = vmatprep.subr.bf16.mxu0 0
        %508 = vmatpush1.bf16.msra.mxu0 0
        %509 = vmatprep.subr.bf16.mxu0 0
        %510 = vmatpush1.bf16.msra.mxu0 0
        %511 = vmatprep.subr.bf16.mxu0 0
        %512 = vmatpush1.bf16.msra.mxu0 0
        %513 = vmatprep.subr.bf16.mxu0 0
        %514 = vmatpush1.bf16.msra.mxu0 0
        %515 = vmatprep.subr.bf16.mxu0 0
        %516 = vmatpush1.bf16.msra.mxu0 0
        %517 = vmatprep.subr.bf16.mxu0 0
        %518 = vmatpush1.bf16.msra.mxu0 0
        %519 = vmatprep.subr.bf16.mxu0 0
        %520 = vmatpush1.bf16.msra.mxu0 0
        %521 = vmatprep.mubr.bf16.mxu0 0
        %522 = vmatmul.mubr.bf16.gmra.mrb[0].mxu0 %v487
        %v523 = vpop.f32.mrb[0].mxu0
        %v524 = vadd.f32 %v484, %v523
        %v525 = vpop.f32.mrb[0].mxu0
        %v526 = vpop.f32.mrb[0].mxu0
        %v527 = vpop.f32.mrb[0].mxu0
        %528 = vdwg.mxu0
        %vm529 = vcmask 785408
        %530 = vst.msk [vmem:[%s368] sm:$0xff] %vm529, %v524
        %s531 = sand.u32 %s229, 1
        %s532 = scalar_lea.sflag [#allocation3], %s531
        %s533 = sand.u32 %s229, 1
        %s534 = smul.addr %s533, 8
        %s535 = scalar_lea.vmem [#allocation2], %s534
        %s536 = sand.u32 %s257, 1
        %s537 = scalar_lea.sflag [#allocation5], %s536
        %s538 = sand.u32 %s257, 1
        %s539 = smul.addr %s538, 8
        %s540 = scalar_lea.vmem [#allocation4], %s539
        // Predicated region
        $region53: #{tpu_custom_call.1} parent=51 // pred_check
          %p541 = pneg %p239
        $region54: #{tpu_custom_call.1} parent=51 // pred_check_branch
          %543 = sbr.rel (%p541) target = $region56
        $region55: #{tpu_custom_call.1} parent=51 // pred_region
          %s544 = sadd.s32 %s32, %s31
          %s546 = ssub.s32 128, 128
          %547 = vsyncadd %s532, %s546
          %s548 = smul.addr %s544, 128
          %s549 = scalar_lea.hbm %s8, %s548
          %s551 = sshll.u32 %s535, 4
          %s552 = int_to_ptr.vmem [resolvable:$true] %s551
          %554 = dma.vmem_to_hbm [thread:$0]  %s552, 128, %s549, %s532
        $region56: #{tpu_custom_call.1} parent=51 // pred_fallthru
          _
        // Predicated region
        $region57: #{tpu_custom_call.1} parent=51 // pred_check
          %p555 = pneg %p267
        $region58: #{tpu_custom_call.1} parent=51 // pred_check_branch
          %557 = sbr.rel (%p555) target = $region60
        $region59: #{tpu_custom_call.1} parent=51 // pred_region
          %s558 = sadd.s32 %s32, %s31
          %s560 = ssub.s32 128, 128
          %561 = vsyncadd %s537, %s560
          %s562 = smul.addr %s558, 128
          %s563 = scalar_lea.hbm %s9, %s562
          %s565 = sshll.u32 %s540, 4
          %s566 = int_to_ptr.vmem [resolvable:$true] %s565
          %568 = dma.vmem_to_hbm [thread:$0]  %s566, 128, %s563, %s537
        $region60: #{tpu_custom_call.1} parent=51 // pred_fallthru
          _
      $region52: #{tpu_custom_call.1} parent=5 // pred_fallthru
        _
      %p569 = scmp.le.s32.totalorder 2, %s22
      // Predicated region
      $region61: #{tpu_custom_call.1} parent=5 // pred_check
        %p570 = pneg %p569
      $region62: #{tpu_custom_call.1} parent=5 // pred_check_branch
        %572 = sbr.rel (%p570) target = $region64
      $region63: #{tpu_custom_call.1} parent=5 // pred_region
        %s573 = ssub.s32 %s22, 2
        // Predicated region
        $region65: #{tpu_custom_call.1} parent=63 // pred_check
          %p574 = pneg %p245
        $region66: #{tpu_custom_call.1} parent=63 // pred_check_branch
          %576 = sbr.rel (%p574) target = $region68
        $region67: #{tpu_custom_call.1} parent=63 // pred_region
          %s577 = sand.u32 %s230, 1
          %s578 = scalar_lea.sflag [#allocation3], %s577
          %s579 = sand.u32 %s230, 1
          %s580 = smul.addr %s579, 8
          %s581 = scalar_lea.vmem [#allocation2], %s580
          %582 = dma.done %s578, 128
        $region68: #{tpu_custom_call.1} parent=63 // pred_fallthru
          _
        // Predicated region
        $region69: #{tpu_custom_call.1} parent=63 // pred_check
          %p583 = pneg %p273
        $region70: #{tpu_custom_call.1} parent=63 // pred_check_branch
          %585 = sbr.rel (%p583) target = $region72
        $region71: #{tpu_custom_call.1} parent=63 // pred_region
          %s586 = sand.u32 %s258, 1
          %s587 = scalar_lea.sflag [#allocation5], %s586
          %s588 = sand.u32 %s258, 1
          %s589 = smul.addr %s588, 8
          %s590 = scalar_lea.vmem [#allocation4], %s589
          %591 = dma.done %s587, 128
        $region72: #{tpu_custom_call.1} parent=63 // pred_fallthru
          _
      $region64: #{tpu_custom_call.1} parent=5 // pred_fallthru
        _
    $region6: #{tpu_custom_call.1} parent=1 // loop_footer
      %s26 = sadd.s32 1, %s22
    $region7: #{tpu_custom_call.1} parent=1 // loop_footer_branch
      %21 = sbr.rel target = $region3
    $region8: #{tpu_custom_call.1} parent=1 // loop_exit
      _
    %592 = vsyncpa [#allocation3], 1
    %s593 = scalar_lea.sflag [#allocation3], 1
    %594 = vsyncpa %s593, 1
    %595 = vsyncpa [#allocation5], 1
    %s596 = scalar_lea.sflag [#allocation5], 1
    %597 = vsyncpa %s596, 1

</llo_original>
